<compile_context>
chip_gen: v5e
topology: v5e:2x2
jax: 0.10.0
libtpu: 0.0.40
codegen_flags: <defaults>
</compile_context>

<pallas_src>
import functools

import jax
import jax.numpy as jnp
from jax.experimental import pallas as pl
from jax.experimental.pallas import tpu as pltpu

BN_EPS = 1e-5


def _largest_divisor_tile(dim, candidates):
    """Largest candidate <= dim that divides dim, else the full extent."""
    for c in candidates:
        if c <= dim and dim % c == 0:
            return c
    return dim


def _choose_tn(batch, n_out, strip_budget_bytes):
    """Pick the n_out tile: lane-dense, strip fits VMEM, prefer >= 2 strips
    so the parallel axis can shard across v7x's two TensorCores."""
    cands = [c for c in (512, 256, 128)
             if n_out % c == 0 and 2 * batch * c * 4 <= strip_budget_bytes]
    if not cands:
        return n_out                      # full-extent block (small n_out)
    multi = [c for c in cands if n_out // c >= 2]
    return multi[0] if multi else cands[0]


def _fused_linear_bn_relu_kernel(x_ref, w_ref, g_ref, b_ref, o_ref, sum_ref,
                                 *, tm, kt, mt, inv_batch, eps):
    # grid = (j: n_out strip [parallel], k: n_in reduction, i: batch tiles)
    k = pl.program_id(1)
    i = pl.program_id(2)
    rows = pl.ds(pl.multiple_of(i * tm, tm), tm)

    # New n_out strip: reset the streaming per-feature sum.
    @pl.when(jnp.logical_and(k == 0, i == 0))
    def _():
        sum_ref[...] = jnp.zeros_like(sum_ref)

    # MXU: (tm, tk) @ (tk, tn) with f32 accumulation, accumulated directly into
    # the VMEM-resident (B, tn) output strip (output block index fixed at (0,j)).
    partial = jnp.dot(x_ref[...], w_ref[...],
                      preferred_element_type=jnp.float32)

    if kt == 1:
        o_ref[rows, :] = partial
        y_rows = partial
    else:
        @pl.when(k == 0)
        def _():
            o_ref[rows, :] = partial

        @pl.when(k > 0)
        def _():
            o_ref[rows, :] += partial

        y_rows = None

    # Row block's n_in reduction complete: fold into the running feature sum.
    @pl.when(k == kt - 1)
    def _():
        y = y_rows if y_rows is not None else o_ref[rows, :]
        sum_ref[...] += jnp.sum(y, axis=0, keepdims=True)

    # Final grid step for this strip: centered (two-pass) variance over the
    # resident strip, then fused normalize + affine + ReLU written in place.
    @pl.when(jnp.logical_and(k == kt - 1, i == mt - 1))
    def _():
        y_all = o_ref[...]                                  # (B, tn) f32, VMEM
        mean = sum_ref[...] * inv_batch
        centered = y_all - mean
        var = jnp.sum(centered * centered, axis=0, keepdims=True) * inv_batch
        scale = jax.lax.rsqrt(var + eps) * g_ref[...]       # rstd * gamma
        shift = b_ref[...] - mean * scale                   # beta - mean*scale
        o_ref[...] = jnp.maximum(y_all * scale + shift, 0.0).astype(o_ref.dtype)


def basic_layer(x, weight_t, gamma, beta, *, tm=None, tn=None, tk=None,
                mxu_dtype=jnp.bfloat16, eps=BN_EPS):
    """x: (B, n_in); weight_t: (n_in, n_out) (Linear weight transposed);
    gamma/beta: (n_out,).  Returns ReLU(BatchNorm1d(x @ weight_t)) in f32."""
    B, n_in = x.shape
    n_in_w, n_out = weight_t.shape
    assert n_in_w == n_in, (n_in_w, n_in)

    # Feed the MXU narrow inputs (bf16 on v6e/v7x) with f32 accumulation.
    x_mxu = x.astype(mxu_dtype)
    w_mxu = weight_t.astype(mxu_dtype)
    g2 = gamma.reshape(1, n_out).astype(jnp.float32)
    b2 = beta.reshape(1, n_out).astype(jnp.float32)
    in_bytes = jnp.dtype(mxu_dtype).itemsize

    strip_budget = 24 << 20                    # resident (B, tn) f32 strip, x2
    if tm is None:
        tm = _largest_divisor_tile(B, (512, 256, 128))
    if tk is None:                             # as large as possible: fewer k steps
        tk = _largest_divisor_tile(n_in, (2048, 1024, 512, 256, 128))
    if tn is None:
        tn = _choose_tn(B, n_out, strip_budget)

    for name, t, d in (("tm", tm, B), ("tn", tn, n_out), ("tk", tk, n_in)):
        if d % t != 0:
            raise ValueError(f"{name}={t} must evenly divide {d}")

    nt, kt, mt = n_out // tn, n_in // tk, B // tm

    kernel = functools.partial(
        _fused_linear_bn_relu_kernel,
        tm=tm, kt=kt, mt=mt, inv_batch=1.0 / B, eps=eps)

    # Explicit VMEM budget: resident strip + double-buffered operands; stay
    # comfortably under v7x's 64 MiB/TC while unlocking > 32 MiB when needed.
    vmem_est = (2 * B * tn * 4                 # resident output strip (x2 buffers)
                + 2 * tm * tk * in_bytes       # x tiles
                + 2 * tk * tn * in_bytes       # W strip tiles
                + 8 * tn * 4)                  # gamma / beta / sum scratch
    vmem_limit = int(min(max(vmem_est + (8 << 20), 32 << 20), 56 << 20))

    return pl.pallas_call(
        kernel,
        out_shape=jax.ShapeDtypeStruct((B, n_out), jnp.float32),
        grid_spec=pltpu.PrefetchScalarGridSpec(
            num_scalar_prefetch=0,
            grid=(nt, kt, mt),                                    # (j, k, i)
            in_specs=[
                pl.BlockSpec((tm, tk), lambda j, k, i: (i, k)),   # x tile
                pl.BlockSpec((tk, tn), lambda j, k, i: (k, j)),   # W strip tile
                pl.BlockSpec((1, tn), lambda j, k, i: (0, j)),    # gamma
                pl.BlockSpec((1, tn), lambda j, k, i: (0, j)),    # beta
            ],
            out_specs=pl.BlockSpec((B, tn), lambda j, k, i: (0, j)),
            scratch_shapes=[pltpu.VMEM((1, tn), jnp.float32)],    # feature sum
        ),
        compiler_params=pltpu.CompilerParams(
            dimension_semantics=("parallel", "arbitrary", "arbitrary"),
            vmem_limit_bytes=vmem_limit),
    )(x_mxu, w_mxu, g2, b2)


def reference(x, weight_t, gamma, beta, *, mxu_dtype=jnp.float32, eps=BN_EPS):
    if mxu_dtype == jnp.float32:
        y = jnp.dot(x, weight_t, precision=jax.lax.Precision.HIGHEST)
    else:
        y = jnp.dot(x.astype(mxu_dtype), weight_t.astype(mxu_dtype),
                    preferred_element_type=jnp.float32)
    mean = jnp.mean(y, axis=0, keepdims=True)
    var = jnp.mean((y - mean) ** 2, axis=0, keepdims=True)
    y_hat = (y - mean) * jax.lax.rsqrt(var + eps)
    return jnp.maximum(y_hat * gamma[None, :] + beta[None, :], 0.0)


if __name__ == "__main__":
    # Small but tiling-exercising shapes.
    B, n_in, n_out = 256, 256, 256
    key = jax.random.PRNGKey(0)
    kx, kw, kg, kb = jax.random.split(key, 4)

    x = jax.random.normal(kx, (B, n_in), dtype=jnp.float32)

    # nn.Linear(n_in, n_out, bias=False).weight is (n_out, n_in); store transposed.
    bound = 1.0 / (n_in ** 0.5)
    weight = jax.random.uniform(kw, (n_out, n_in), dtype=jnp.float32,
                                minval=-bound, maxval=bound)
    weight_t = weight.T
    gamma = 1.0 + 0.1 * jax.random.normal(kg, (n_out,), dtype=jnp.float32)
    beta = 0.05 * jax.random.normal(kb, (n_out,), dtype=jnp.float32)

    # Config A: auto tiles (kt=1, resident strip), bf16 MXU fast path.
    out_bf16 = jax.block_until_ready(basic_layer(x, weight_t, gamma, beta))
    ref_bf16 = reference(x, weight_t, gamma, beta, mxu_dtype=jnp.bfloat16)
    assert out_bf16.shape == (B, n_out)
    assert jnp.allclose(out_bf16, ref_bf16, atol=2e-3, rtol=2e-3), \
        float(jnp.max(jnp.abs(out_bf16 - ref_bf16)))
    # Loose sanity check against the full-f32 reference.
    ref_f32 = reference(x, weight_t, gamma, beta, mxu_dtype=jnp.float32)
    assert jnp.allclose(out_bf16, ref_f32, atol=5e-2, rtol=5e-2), \
        float(jnp.max(jnp.abs(out_bf16 - ref_f32)))

    # Config B: explicit 128-tiles exercising the full (j, k, i) grid and the
    # multi-k accumulation path, f32 MXU inputs, tight tolerance.
    out_f32 = jax.block_until_ready(
        basic_layer(x, weight_t, gamma, beta, tm=128, tn=128, tk=128,
                    mxu_dtype=jnp.float32))
    assert jnp.allclose(out_f32, ref_f32, atol=1e-4, rtol=1e-4), \
        float(jnp.max(jnp.abs(out_f32 - ref_f32)))

    print("KERNEL_OK")
</pallas_src>

<mosaic_0001>
module attributes {stable_mosaic.version = 11 : i64} {
  func.func @_fused_linear_bn_relu_kernel(%arg0: i32, %arg1: i32, %arg2: i32, %arg3: memref<256x256xbf16, #tpu.memory_space<vmem>>, %arg4: memref<256x128xbf16, #tpu.memory_space<vmem>>, %arg5: memref<1x128xf32, #tpu.memory_space<vmem>>, %arg6: memref<1x128xf32, #tpu.memory_space<vmem>>, %arg7: memref<256x128xf32, #tpu.memory_space<vmem>>, %arg8: memref<1x128xf32, #tpu.memory_space<vmem>>) attributes {dimension_semantics = [#tpu.dimension_semantics<parallel>, #tpu.dimension_semantics<arbitrary>, #tpu.dimension_semantics<arbitrary>], iteration_bounds = array<i64: 2, 1, 1>, scalar_prefetch = 0 : i64, scratch_operands = 1 : i64, tpu.core_type = #tpu.core_type<tc>, window_params = [{transform_indices = @transform_0, window_bounds = array<i64: 256, 256>}, {transform_indices = @transform_1, window_bounds = array<i64: 256, 128>}, {transform_indices = @transform_2, window_bounds = array<i64: 1, 128>}, {transform_indices = @transform_3, window_bounds = array<i64: 1, 128>}, {transform_indices = @transform_4, window_bounds = array<i64: 256, 128>}]} {
    %c256_i32 = arith.constant 256 : i32
    %0 = arith.muli %arg2, %c256_i32 : i32
    %1 = tpu.assume_multiple %0, 256 : i32
    %c0_i32 = arith.constant 0 : i32
    %2 = arith.cmpi eq, %arg1, %c0_i32 : i32
    %c0_i32_0 = arith.constant 0 : i32
    %3 = arith.cmpi eq, %arg2, %c0_i32_0 : i32
    %4 = arith.andi %2, %3 : i1
    %5 = arith.extui %4 : i1 to i32
    %c0_i32_1 = arith.constant 0 : i32
    %6 = arith.cmpi ne, %5, %c0_i32_1 : i32
    scf.if %6 {
      %cst_11 = arith.constant 0.000000e+00 : f32
      %20 = vector.broadcast %cst_11 : f32 to vector<1x128xf32>
      %c0_12 = arith.constant 0 : index
      %c0_13 = arith.constant 0 : index
      %21 = vector.load %arg8[%c0_12, %c0_13] : memref<1x128xf32, #tpu.memory_space<vmem>>, vector<1x128xf32>
      tpu.vector_store %arg8[%c0_12, %c0_13], %20 {strides = array<i32>} : memref<1x128xf32, #tpu.memory_space<vmem>>, vector<1x128xf32>,
    } else {
    }
    %c0 = arith.constant 0 : index
    %c0_2 = arith.constant 0 : index
    %7 = vector.load %arg3[%c0, %c0_2] : memref<256x256xbf16, #tpu.memory_space<vmem>>, vector<256x256xbf16>
    %c0_3 = arith.constant 0 : index
    %c0_4 = arith.constant 0 : index
    %8 = vector.load %arg4[%c0_3, %c0_4] : memref<256x128xbf16, #tpu.memory_space<vmem>>, vector<256x128xbf16>
    %cst = arith.constant dense<0.000000e+00> : vector<256x128xf32>
    %9 = tpu.matmul %7, %8, %cst {dimension_numbers = #tpu.dot_dimension_numbers<[1], [0], [0], [1], [0, 0, 1, 1], [], []>} : vector<256x256xbf16>, vector<256x128xbf16>, vector<256x128xf32> -> vector<256x128xf32>
    %10 = arith.index_cast %1 : i32 to index
    %c0_5 = arith.constant 0 : index
    %11 = vector.load %arg7[%10, %c0_5] : memref<256x128xf32, #tpu.memory_space<vmem>>, vector<256x128xf32>
    tpu.vector_store %arg7[%10, %c0_5], %9 {strides = array<i32>} : memref<256x128xf32, #tpu.memory_space<vmem>>, vector<256x128xf32>,
    %c0_i32_6 = arith.constant 0 : i32
    %12 = arith.cmpi eq, %arg1, %c0_i32_6 : i32
    %13 = arith.extui %12 : i1 to i32
    %c0_i32_7 = arith.constant 0 : i32
    %14 = arith.cmpi ne, %13, %c0_i32_7 : i32
    scf.if %14 {
      %c0_11 = arith.constant 0 : index
      %c0_12 = arith.constant 0 : index
      %20 = vector.load %arg8[%c0_11, %c0_12] : memref<1x128xf32, #tpu.memory_space<vmem>>, vector<1x128xf32>
      %cst_13 = arith.constant dense<0.000000e+00> : vector<128xf32>
      %21 = vector.multi_reduction <add>, %9, %cst_13 [0] : vector<256x128xf32> to vector<128xf32>
      %22 = vector.shape_cast %21 : vector<128xf32> to vector<1x128xf32>
      %23 = arith.addf %20, %22 : vector<1x128xf32>
      %c0_14 = arith.constant 0 : index
      %c0_15 = arith.constant 0 : index
      %24 = vector.load %arg8[%c0_14, %c0_15] : memref<1x128xf32, #tpu.memory_space<vmem>>, vector<1x128xf32>
      tpu.vector_store %arg8[%c0_14, %c0_15], %23 {strides = array<i32>} : memref<1x128xf32, #tpu.memory_space<vmem>>, vector<1x128xf32>,
    } else {
    }
    %c0_i32_8 = arith.constant 0 : i32
    %15 = arith.cmpi eq, %arg1, %c0_i32_8 : i32
    %c0_i32_9 = arith.constant 0 : i32
    %16 = arith.cmpi eq, %arg2, %c0_i32_9 : i32
    %17 = arith.andi %15, %16 : i1
    %18 = arith.extui %17 : i1 to i32
    %c0_i32_10 = arith.constant 0 : i32
    %19 = arith.cmpi ne, %18, %c0_i32_10 : i32
    scf.if %19 {
      %c0_11 = arith.constant 0 : index
      %c0_12 = arith.constant 0 : index
      %20 = vector.load %arg7[%c0_11, %c0_12] : memref<256x128xf32, #tpu.memory_space<vmem>>, vector<256x128xf32>
      %c0_13 = arith.constant 0 : index
      %c0_14 = arith.constant 0 : index
      %21 = vector.load %arg8[%c0_13, %c0_14] : memref<1x128xf32, #tpu.memory_space<vmem>>, vector<1x128xf32>
      %cst_15 = arith.constant 3.906250e-03 : f32
      %22 = vector.broadcast %cst_15 : f32 to vector<1x128xf32>
      %23 = arith.mulf %21, %22 : vector<1x128xf32>
      %24 = vector.broadcast %23 : vector<1x128xf32> to vector<256x128xf32>
      %25 = arith.subf %20, %24 : vector<256x128xf32>
      %26 = arith.mulf %25, %25 : vector<256x128xf32>
      %cst_16 = arith.constant dense<0.000000e+00> : vector<128xf32>
      %27 = vector.multi_reduction <add>, %26, %cst_16 [0] : vector<256x128xf32> to vector<128xf32>
      %28 = vector.shape_cast %27 : vector<128xf32> to vector<1x128xf32>
      %cst_17 = arith.constant 3.906250e-03 : f32
      %29 = vector.broadcast %cst_17 : f32 to vector<1x128xf32>
      %30 = arith.mulf %28, %29 : vector<1x128xf32>
      %cst_18 = arith.constant 9.99999974E-6 : f32
      %31 = vector.broadcast %cst_18 : f32 to vector<1x128xf32>
      %32 = arith.addf %30, %31 : vector<1x128xf32>
      %33 = math.rsqrt %32 : vector<1x128xf32>
      %c0_19 = arith.constant 0 : index
      %c0_20 = arith.constant 0 : index
      %34 = vector.load %arg5[%c0_19, %c0_20] : memref<1x128xf32, #tpu.memory_space<vmem>>, vector<1x128xf32>
      %35 = arith.mulf %33, %34 : vector<1x128xf32>
      %c0_21 = arith.constant 0 : index
      %c0_22 = arith.constant 0 : index
      %36 = vector.load %arg6[%c0_21, %c0_22] : memref<1x128xf32, #tpu.memory_space<vmem>>, vector<1x128xf32>
      %37 = arith.mulf %23, %35 : vector<1x128xf32>
      %38 = arith.subf %36, %37 : vector<1x128xf32>
      %39 = vector.broadcast %35 : vector<1x128xf32> to vector<256x128xf32>
      %40 = arith.mulf %20, %39 : vector<256x128xf32>
      %41 = vector.broadcast %38 : vector<1x128xf32> to vector<256x128xf32>
      %42 = arith.addf %40, %41 : vector<256x128xf32>
      %cst_23 = arith.constant 0.000000e+00 : f32
      %43 = vector.broadcast %cst_23 : f32 to vector<256x128xf32>
      %44 = arith.maximumf %42, %43 : vector<256x128xf32>
      %c0_24 = arith.constant 0 : index
      %c0_25 = arith.constant 0 : index
      %45 = vector.load %arg7[%c0_24, %c0_25] : memref<256x128xf32, #tpu.memory_space<vmem>>, vector<256x128xf32>
      tpu.vector_store %arg7[%c0_24, %c0_25], %44 {strides = array<i32>} : memref<256x128xf32, #tpu.memory_space<vmem>>, vector<256x128xf32>,
    } else {
    }
    return
  }
  func.func @transform_0(%arg0: i32, %arg1: i32, %arg2: i32) -> (i32, i32) {
    %c0_i32 = arith.constant 0 : i32
    return %arg2, %arg1 : i32, i32
  }
  func.func @transform_1(%arg0: i32, %arg1: i32, %arg2: i32) -> (i32, i32) {
    %c0_i32 = arith.constant 0 : i32
    return %arg1, %arg0 : i32, i32
  }
  func.func @transform_2(%arg0: i32, %arg1: i32, %arg2: i32) -> (i32, i32) {
    %c0_i32 = arith.constant 0 : i32
    %c0_i32_0 = arith.constant 0 : i32
    return %c0_i32, %arg0 : i32, i32
  }
  func.func @transform_3(%arg0: i32, %arg1: i32, %arg2: i32) -> (i32, i32) {
    %c0_i32 = arith.constant 0 : i32
    %c0_i32_0 = arith.constant 0 : i32
    return %c0_i32, %arg0 : i32, i32
  }
  func.func @transform_4(%arg0: i32, %arg1: i32, %arg2: i32) -> (i32, i32) {
    %c0_i32 = arith.constant 0 : i32
    %c0_i32_0 = arith.constant 0 : i32
    return %c0_i32, %arg0 : i32, i32
  }
}

</mosaic_0001>

<llo_original>
// kernel: tpu_custom_call.1
$region0: #{tpu_custom_call.1}
  #allocation0 [shape = 'u32[]', space=smem, size = 0x4, offset = 0x4, fixed_abs, tag = 'smem constant byte address 0x4 - core index']
  #allocation1 [shape = 'u32[72,128]{1,0:T(1,128)}', space=vmem, size = 0x9000, scoped, tag = 'internal scratch']
  #allocation2 [shape = 'f32[1,128]{1,0:T(1,128)}', space=vmem, size = 0x200, scoped, tag = 'scratch operand']
  %s0 = inlined_call_operand.hbm [shape: bf16[256,256], index: 0, kind: input, shape index: {}]
  %s1 = inlined_call_operand.hbm [shape: bf16[256,256], index: 1, kind: input, shape index: {}]
  %s2 = inlined_call_operand.hbm [shape: f32[1,256], index: 2, kind: input, shape index: {}]
  %s3 = inlined_call_operand.vmem [shape: f32[1,256], index: 3, kind: input, shape index: {}]
  %s4 = inlined_call_operand.hbm [shape: f32[256,256], index: 4, kind: output, shape index: {}]
  %s5 = sld [smem:[#allocation0]]
  $region73: #{tpu_custom_call.1} parent=0
    _
  %s7 = ssub.s32 1, %s5
  %s8 = scalar_select 0, %s7, %s5
  $region1: #{tpu_custom_call.1} parent=0
    #allocation3 [shape = 'u8[131072]{0}', space=vmem, size = 0x20000, scoped, tag = 'input window, operand 0, single buffered']
    #allocation4 [shape = 's32[2]{0}', space=sflag, size = 0x8, scoped, tag = 'scoped memory for tpu_custom_call.1']
    #allocation5 [shape = 's32[2]{0}', space=sflag, size = 0x8, scoped, tag = 'scoped memory for tpu_custom_call.1']
    #allocation6 [shape = 'u8[131072]{0}', space=vmem, size = 0x20000, scoped, tag = 'input window, operand 1']
    #allocation7 [shape = 's32[2]{0}', space=sflag, size = 0x8, scoped, tag = 'scoped memory for tpu_custom_call.1']
    #allocation8 [shape = 'u8[1024]{0}', space=vmem, size = 0x400, scoped, tag = 'input window, operand 2']
    #allocation9 [shape = 'u8[262144]{0}', space=vmem, size = 0x40000, scoped, tag = 'output window, operand 0']
    %9 = vsyncpa [#allocation4], 0
    %10 = vsyncpa [#allocation7], 0
    %s11 = scalar_lea.sflag [#allocation7], 1
    %12 = vsyncpa %s11, 0
    %13 = vsyncpa [#allocation5], 0
    %s14 = scalar_lea.sflag [#allocation5], 1
    %15 = vsyncpa %s14, 0
    loop: start=0, step=1, limit=4
    $region2: #{tpu_custom_call.1} parent=1 // loop_pre_header
      _
    $region3: #{tpu_custom_call.1} parent=1 // loop_header
      %s17 = sphi 0, %s21
      %p18 = scmp.ge.s32.totalorder %s17, 4
      %s24 = sphi 0, %s43
      %s25 = sphi 0, %s39
      %s26 = sphi 0, %s35
      %s27 = sphi 0, %s24
      %s28 = sphi 0, %s25
      %s29 = sphi 0, %s26
      %s30 = sphi 0, %s27
      %s31 = sphi 0, %s28
      %s32 = sphi 0, %s29
      %s48 = sphi 0, %s50
      %s51 = sphi 0, %s48
      %s52 = sphi 0, %s51
      %s68 = sphi 0, %s52
      %s76 = sphi 0, %s78
      %s79 = sphi 0, %s76
      %s80 = sphi 0, %s79
      %s96 = sphi 0, %s80
      %s102 = sphi 0, %s104
      %s105 = sphi 0, %s102
      %s106 = sphi 0, %s105
      %s122 = sphi 0, %s106
      %s128 = sphi 0, %s130
      %s131 = sphi 0, %s128
      %s132 = sphi 0, %s131
      %s148 = sphi 0, %s132
      %s154 = sphi 0, %s156
      %s157 = sphi 0, %s154
      %s158 = sphi 0, %s157
      %s174 = sphi 0, %s158
    $region4: #{tpu_custom_call.1} parent=1 // loop_header_branch
      %20 = sbr.rel (%p18) target = $region8
    $region5: #{tpu_custom_call.1} parent=1 // loop_body
      %s22 = ssub.s32 %s17, 1
      %s23 = ssub.s32 %s17, 2
      %s33 = sadd.s32 1, %s26
      %p34 = scmp.ge.s32.totalorder %s33, 1
      %s35 = scalar_select %p34, 0, %s33
      %s36 = sadd.s32 1, %s25
      %s37 = scalar_select %p34, %s36, %s25
      %p38 = scmp.ge.s32.totalorder %s37, 1
      %s39 = scalar_select %p38, 0, %s37
      %s40 = sadd.s32 1, %s24
      %s41 = scalar_select %p38, %s40, %s24
      %p42 = scmp.ge.s32.totalorder %s41, 2
      %s43 = scalar_select %p42, 0, %s41
      %s44 = ssub.s32 %s26, %s35
      %s45 = ssub.s32 %s25, %s39
      %s46 = sor.u32 %s44, %s45
      %p47 = scmp.eq.s32.totalorder %s46, 0
      %s49 = sadd.s32 %s48, 1
      %s50 = scalar_select %p47, %s48, %s49
      %p53 = pneg %p47
      %p54 = scmp.eq.s32.totalorder %s17, 1
      %p55 = por %p53, %p54
      %p56 = scmp.ne.s32.totalorder %s48, %s51
      %p57 = scmp.eq.s32.totalorder %s17, 0
      %p58 = por %p56, %p57
      %p59 = scmp.ne.s32.totalorder %s48, %s51
      %p60 = scmp.eq.s32.totalorder %s22, 1
      %p61 = por %p59, %p60
      %p62 = scmp.ne.s32.totalorder %s51, %s52
      %p63 = scmp.eq.s32.totalorder %s22, 0
      %p64 = por %p62, %p63
      %p65 = scmp.ne.s32.totalorder %s51, %s52
      %p66 = scmp.eq.s32.totalorder %s23, 1
      %p67 = por %p65, %p66
      %p69 = scmp.ne.s32.totalorder %s52, %s68
      %p70 = scmp.eq.s32.totalorder %s23, 0
      %p71 = por %p69, %p70
      %s72 = ssub.s32 %s25, %s39
      %s73 = ssub.s32 %s24, %s43
      %s74 = sor.u32 %s72, %s73
      %p75 = scmp.eq.s32.totalorder %s74, 0
      %s77 = sadd.s32 %s76, 1
      %s78 = scalar_select %p75, %s76, %s77
      %p81 = pneg %p75
      %p82 = scmp.eq.s32.totalorder %s17, 1
      %p83 = por %p81, %p82
      %p84 = scmp.ne.s32.totalorder %s76, %s79
      %p85 = scmp.eq.s32.totalorder %s17, 0
      %p86 = por %p84, %p85
      %p87 = scmp.ne.s32.totalorder %s76, %s79
      %p88 = scmp.eq.s32.totalorder %s22, 1
      %p89 = por %p87, %p88
      %p90 = scmp.ne.s32.totalorder %s79, %s80
      %p91 = scmp.eq.s32.totalorder %s22, 0
      %p92 = por %p90, %p91
      %p93 = scmp.ne.s32.totalorder %s79, %s80
      %p94 = scmp.eq.s32.totalorder %s23, 1
      %p95 = por %p93, %p94
      %p97 = scmp.ne.s32.totalorder %s80, %s96
      %p98 = scmp.eq.s32.totalorder %s23, 0
      %p99 = por %p97, %p98
      %s100 = ssub.s32 %s24, %s43
      %p101 = scmp.eq.s32.totalorder %s100, 0
      %s103 = sadd.s32 %s102, 1
      %s104 = scalar_select %p101, %s102, %s103
      %p107 = pneg %p101
      %p108 = scmp.eq.s32.totalorder %s17, 1
      %p109 = por %p107, %p108
      %p110 = scmp.ne.s32.totalorder %s102, %s105
      %p111 = scmp.eq.s32.totalorder %s17, 0
      %p112 = por %p110, %p111
      %p113 = scmp.ne.s32.totalorder %s102, %s105
      %p114 = scmp.eq.s32.totalorder %s22, 1
      %p115 = por %p113, %p114
      %p116 = scmp.ne.s32.totalorder %s105, %s106
      %p117 = scmp.eq.s32.totalorder %s22, 0
      %p118 = por %p116, %p117
      %p119 = scmp.ne.s32.totalorder %s105, %s106
      %p120 = scmp.eq.s32.totalorder %s23, 1
      %p121 = por %p119, %p120
      %p123 = scmp.ne.s32.totalorder %s106, %s122
      %p124 = scmp.eq.s32.totalorder %s23, 0
      %p125 = por %p123, %p124
      %s126 = ssub.s32 %s24, %s43
      %p127 = scmp.eq.s32.totalorder %s126, 0
      %s129 = sadd.s32 %s128, 1
      %s130 = scalar_select %p127, %s128, %s129
      %p133 = pneg %p127
      %p134 = scmp.eq.s32.totalorder %s17, 1
      %p135 = por %p133, %p134
      %p136 = scmp.ne.s32.totalorder %s128, %s131
      %p137 = scmp.eq.s32.totalorder %s17, 0
      %p138 = por %p136, %p137
      %p139 = scmp.ne.s32.totalorder %s128, %s131
      %p140 = scmp.eq.s32.totalorder %s22, 1
      %p141 = por %p139, %p140
      %p142 = scmp.ne.s32.totalorder %s131, %s132
      %p143 = scmp.eq.s32.totalorder %s22, 0
      %p144 = por %p142, %p143
      %p145 = scmp.ne.s32.totalorder %s131, %s132
      %p146 = scmp.eq.s32.totalorder %s23, 1
      %p147 = por %p145, %p146
      %p149 = scmp.ne.s32.totalorder %s132, %s148
      %p150 = scmp.eq.s32.totalorder %s23, 0
      %p151 = por %p149, %p150
      %s152 = ssub.s32 %s24, %s43
      %p153 = scmp.eq.s32.totalorder %s152, 0
      %s155 = sadd.s32 %s154, 1
      %s156 = scalar_select %p153, %s154, %s155
      %p159 = pneg %p153
      %p160 = scmp.eq.s32.totalorder %s17, 1
      %p161 = por %p159, %p160
      %p162 = scmp.ne.s32.totalorder %s154, %s157
      %p163 = scmp.eq.s32.totalorder %s17, 0
      %p164 = por %p162, %p163
      %p165 = scmp.ne.s32.totalorder %s154, %s157
      %p166 = scmp.eq.s32.totalorder %s22, 1
      %p167 = por %p165, %p166
      %p168 = scmp.ne.s32.totalorder %s157, %s158
      %p169 = scmp.eq.s32.totalorder %s22, 0
      %p170 = por %p168, %p169
      %p171 = scmp.ne.s32.totalorder %s157, %s158
      %p172 = scmp.eq.s32.totalorder %s23, 1
      %p173 = por %p171, %p172
      %p175 = scmp.ne.s32.totalorder %s158, %s174
      %p176 = scmp.eq.s32.totalorder %s23, 0
      %p177 = por %p175, %p176
      %p178 = scmp.le.s32.totalorder 1, %s17
      %p179 = scmp.lt.s32.totalorder %s17, 3
      %p180 = pnand %p178, %p179
      %p181 = pneg %p180
      // Predicated region
      $region9: #{tpu_custom_call.1} parent=5 // pred_check
        _
      $region10: #{tpu_custom_call.1} parent=5 // pred_check_branch
        %183 = sbr.rel (%p180) target = $region12
      $region11: #{tpu_custom_call.1} parent=5 // pred_region
        %s184 = ssub.s32 %s17, 1
        // Predicated region
        $region13: #{tpu_custom_call.1} parent=11 // pred_check
          %p185 = pneg %p64
        $region14: #{tpu_custom_call.1} parent=11 // pred_check_branch
          %187 = sbr.rel (%p185) target = $region16
        $region15: #{tpu_custom_call.1} parent=11 // pred_region
          %s188 = smul.u32 32, %s29
          %s189 = smul.u32 2, %s28
          %191 = vsyncadd [#allocation4], 0
          %s192 = smul.addr %s188, 2
          %s193 = sadd.s32 %s189, %s192
          %s194 = smul.addr %s193, 4
          %s195 = scalar_lea.hbm %s0, %s194
          %s196 = sshll.u32 %s195, 4
          %s197 = int_to_ptr.hbm [resolvable:$true] %s196
          %s198 = sshll.u32 [#allocation3], 4
          %s199 = int_to_ptr.vmem [resolvable:$true] %s198
          %204 = dma.hbm_to_vmem [thread:$0]  %s197, 4096, %s199, [#allocation4], 128, 128, 8
        $region16: #{tpu_custom_call.1} parent=11 // pred_fallthru
          _
      $region12: #{tpu_custom_call.1} parent=5 // pred_fallthru
        _
      %p205 = scmp.lt.s32.totalorder %s17, 2
      // Predicated region
      $region17: #{tpu_custom_call.1} parent=5 // pred_check
        %p206 = pneg %p205
      $region18: #{tpu_custom_call.1} parent=5 // pred_check_branch
        %208 = sbr.rel (%p206) target = $region20
      $region19: #{tpu_custom_call.1} parent=5 // pred_region
        // Predicated region
        $region21: #{tpu_custom_call.1} parent=19 // pred_check
          %p209 = pneg %p86
        $region22: #{tpu_custom_call.1} parent=19 // pred_check_branch
          %211 = sbr.rel (%p209) target = $region24
        $region23: #{tpu_custom_call.1} parent=19 // pred_region
          %s212 = sand.u32 %s17, 1
          %s213 = scalar_lea.sflag [#allocation7], %s212
          %s214 = sand.u32 %s76, 1
          %s215 = smul.addr %s214, 128
          %s216 = scalar_lea.vmem [#allocation6], %s215
          %s217 = smul.u32 32, %s25
          %219 = vsyncadd %s213, 0
          %s220 = smul.addr %s217, 2
          %s221 = sadd.s32 %s24, %s220
          %s222 = smul.addr %s221, 4
          %s223 = scalar_lea.hbm %s1, %s222
          %s224 = sshll.u32 %s223, 4
          %s225 = int_to_ptr.hbm [resolvable:$true] %s224
          %s226 = sshll.u32 %s216, 4
          %s227 = int_to_ptr.vmem [resolvable:$true] %s226
          %232 = dma.hbm_to_vmem [thread:$0]  %s225, 2048, %s227, %s213, 128, 64, 4
        $region24: #{tpu_custom_call.1} parent=19 // pred_fallthru
          _
        // Predicated region
        $region25: #{tpu_custom_call.1} parent=19 // pred_check
          %p233 = pneg %p112
        $region26: #{tpu_custom_call.1} parent=19 // pred_check_branch
          %235 = sbr.rel (%p233) target = $region28
        $region27: #{tpu_custom_call.1} parent=19 // pred_region
          %s236 = sand.u32 %s17, 1
          %s237 = scalar_lea.sflag [#allocation7], %s236
          %s238 = sand.u32 %s102, 1
          %s239 = scalar_lea.vmem [#allocation8], %s238
          %241 = vsyncadd %s237, 0
          %s242 = scalar_lea.hbm %s2, %s24
          %s244 = sshll.u32 %s242, 4
          %s245 = int_to_ptr.hbm [resolvable:$true] %s244
          %s246 = sshll.u32 %s239, 4
          %s247 = int_to_ptr.vmem [resolvable:$true] %s246
          %249 = dma.hbm_to_vmem [thread:$0]  %s245, 16, %s247, %s237
        $region28: #{tpu_custom_call.1} parent=19 // pred_fallthru
          _
        // Predicated region
        $region29: #{tpu_custom_call.1} parent=19 // pred_check
          %p250 = pneg %p138
        $region30: #{tpu_custom_call.1} parent=19 // pred_check_branch
          %252 = sbr.rel (%p250) target = $region32
        $region31: #{tpu_custom_call.1} parent=19 // pred_region
          %p253 = scmp.lt.s32.totalorder %s24, 1
          %s254 = scalar_select %p253, %s24, 1
          %s255 = scalar_lea.vmem %s3, %s254
        $region32: #{tpu_custom_call.1} parent=19 // pred_fallthru
          _
      $region20: #{tpu_custom_call.1} parent=5 // pred_fallthru
        _
      %p256 = scmp.le.s32.totalorder 1, %s17
      %p257 = scmp.lt.s32.totalorder %s17, 3
      %p258 = pnand %p256, %p257
      %p259 = pneg %p258
      // Predicated region
      $region33: #{tpu_custom_call.1} parent=5 // pred_check
        _
      $region34: #{tpu_custom_call.1} parent=5 // pred_check_branch
        %261 = sbr.rel (%p258) target = $region36
      $region35: #{tpu_custom_call.1} parent=5 // pred_region
        %s262 = ssub.s32 %s17, 1
        // Predicated region
        $region37: #{tpu_custom_call.1} parent=35 // pred_check
          %p263 = pneg %p64
        $region38: #{tpu_custom_call.1} parent=35 // pred_check_branch
          %265 = sbr.rel (%p263) target = $region40
        $region39: #{tpu_custom_call.1} parent=35 // pred_region
          %267 = dma.done [#allocation4], 4096
        $region40: #{tpu_custom_call.1} parent=35 // pred_fallthru
          _
        %s268 = sand.u32 %s22, 1
        %s269 = scalar_lea.sflag [#allocation7], %s268
        %s270 = sand.u32 %s79, 1
        %s271 = smul.addr %s270, 128
        %s272 = scalar_lea.vmem [#allocation6], %s271
        // Predicated region
        $region41: #{tpu_custom_call.1} parent=35 // pred_check
          %p273 = pneg %p92
        $region42: #{tpu_custom_call.1} parent=35 // pred_check_branch
          %275 = sbr.rel (%p273) target = $region44
        $region43: #{tpu_custom_call.1} parent=35 // pred_region
          %277 = dma.done %s269, 2048
        $region44: #{tpu_custom_call.1} parent=35 // pred_fallthru
          _
        %s278 = sand.u32 %s22, 1
        %s279 = scalar_lea.sflag [#allocation7], %s278
        %s280 = sand.u32 %s105, 1
        %s281 = scalar_lea.vmem [#allocation8], %s280
        // Predicated region
        $region45: #{tpu_custom_call.1} parent=35 // pred_check
          %p282 = pneg %p118
        $region46: #{tpu_custom_call.1} parent=35 // pred_check_branch
          %284 = sbr.rel (%p282) target = $region48
        $region47: #{tpu_custom_call.1} parent=35 // pred_region
          %286 = dma.done %s279, 16
        $region48: #{tpu_custom_call.1} parent=35 // pred_fallthru
          _
        %p287 = pneg %p64
        %p288 = pneg %p61
        %s289 = sand.u32 %s22, 1
        %s290 = scalar_lea.sflag [#allocation7], %s289
        %s291 = sand.u32 %s79, 1
        %s292 = smul.addr %s291, 128
        %s293 = scalar_lea.vmem [#allocation6], %s292
        %p294 = pneg %p92
        %p295 = pneg %p89
        %s296 = sand.u32 %s22, 1
        %s297 = scalar_lea.sflag [#allocation7], %s296
        %s298 = sand.u32 %s105, 1
        %s299 = scalar_lea.vmem [#allocation8], %s298
        %p300 = pneg %p118
        %p301 = pneg %p115
        %p302 = scmp.lt.s32.totalorder %s27, 1
        %s303 = scalar_select %p302, %s27, 1
        %s304 = scalar_lea.vmem %s3, %s303
        %p305 = pneg %p144
        %p306 = pneg %p141
        %p307 = pneg %p170
        %p308 = pneg %p167
        %s309 = sand.u32 %s157, 1
        %s310 = scalar_lea.sflag [#allocation5], %s309
        %s311 = sand.u32 %s157, 1
        %s312 = smul.addr %s311, 256
        %s313 = scalar_lea.vmem [#allocation9], %s312
        %s314 = smul.u32 32, %s29
        %s315 = smul.u32 2, %s28
        %s316 = smul.u32 32, %s28
        %p317 = scmp.lt.s32.totalorder %s27, 1
        %s318 = scalar_select %p317, %s27, 1
        %s319 = scalar_lea.vmem %s3, %s318
        %s320 = smul.u32 %s29, 256
        %p321 = scmp.eq.s32.totalorder %s28, 0
        %p322 = scmp.eq.s32.totalorder %s29, 0
        %p323 = pnand %p321, %p322
        %p324 = pneg %p323
        // Predicated region
        $region49: #{tpu_custom_call.1} parent=35 // pred_check
          _
        $region50: #{tpu_custom_call.1} parent=35 // pred_check_branch
          %326 = sbr.rel (%p323) target = $region52
        $region51: #{tpu_custom_call.1} parent=35 // pred_region
          %327 = vst [vmem:[#allocation2] sm:$0x1] 0.0
        $region52: #{tpu_custom_call.1} parent=35 // pred_fallthru
          _
        %v328 = vld [vmem:[#allocation3] sm:$0xff]
        %v329 = vld [vmem:[#allocation3 + $0x8] sm:$0xff]
        %v330 = vld [vmem:[#allocation3 + $0x10] sm:$0xff]
        %v331 = vld [vmem:[#allocation3 + $0x18] sm:$0xff]
        %v332 = vld [vmem:[#allocation3 + $0x20] sm:$0xff]
        %v333 = vld [vmem:[#allocation3 + $0x28] sm:$0xff]
        %v334 = vld [vmem:[#allocation3 + $0x30] sm:$0xff]
        %v335 = vld [vmem:[#allocation3 + $0x38] sm:$0xff]
        %v336 = vld [vmem:[#allocation3 + $0x40] sm:$0xff]
        %v337 = vld [vmem:[#allocation3 + $0x48] sm:$0xff]
        %v338 = vld [vmem:[#allocation3 + $0x50] sm:$0xff]
        %v339 = vld [vmem:[#allocation3 + $0x58] sm:$0xff]
        %v340 = vld [vmem:[#allocation3 + $0x60] sm:$0xff]
        %v341 = vld [vmem:[#allocation3 + $0x68] sm:$0xff]
        %v342 = vld [vmem:[#allocation3 + $0x70] sm:$0xff]
        %v343 = vld [vmem:[#allocation3 + $0x78] sm:$0xff]
        %v344 = vld [vmem:[#allocation3 + $0x80] sm:$0xff]
        %v345 = vld [vmem:[#allocation3 + $0x88] sm:$0xff]
        %v346 = vld [vmem:[#allocation3 + $0x90] sm:$0xff]
        %v347 = vld [vmem:[#allocation3 + $0x98] sm:$0xff]
        %v348 = vld [vmem:[#allocation3 + $0xa0] sm:$0xff]
        %v349 = vld [vmem:[#allocation3 + $0xa8] sm:$0xff]
        %v350 = vld [vmem:[#allocation3 + $0xb0] sm:$0xff]
        %v351 = vld [vmem:[#allocation3 + $0xb8] sm:$0xff]
        %v352 = vld [vmem:[#allocation3 + $0xc0] sm:$0xff]
        %v353 = vld [vmem:[#allocation3 + $0xc8] sm:$0xff]
        %v354 = vld [vmem:[#allocation3 + $0xd0] sm:$0xff]
        %v355 = vld [vmem:[#allocation3 + $0xd8] sm:$0xff]
        %v356 = vld [vmem:[#allocation3 + $0xe0] sm:$0xff]
        %v357 = vld [vmem:[#allocation3 + $0xe8] sm:$0xff]
        %v358 = vld [vmem:[#allocation3 + $0xf0] sm:$0xff]
        %v359 = vld [vmem:[#allocation3 + $0xf8] sm:$0xff]
        %v360 = vld [vmem:[%s272] sm:$0xf]
        %v361 = vld [vmem:[%s272 + $0x4] sm:$0xf]
        %v362 = vld [vmem:[%s272 + $0x8] sm:$0xf]
        %v363 = vld [vmem:[%s272 + $0xc] sm:$0xf]
        %v364 = vld [vmem:[%s272 + $0x10] sm:$0xf]
        %v365 = vld [vmem:[%s272 + $0x14] sm:$0xf]
        %v366 = vld [vmem:[%s272 + $0x18] sm:$0xf]
        %v367 = vld [vmem:[%s272 + $0x1c] sm:$0xf]
        %v368 = vld [vmem:[%s272 + $0x20] sm:$0xf]
        %v369 = vld [vmem:[%s272 + $0x24] sm:$0xf]
        %v370 = vld [vmem:[%s272 + $0x28] sm:$0xf]
        %v371 = vld [vmem:[%s272 + $0x2c] sm:$0xf]
        %v372 = vld [vmem:[%s272 + $0x30] sm:$0xf]
        %v373 = vld [vmem:[%s272 + $0x34] sm:$0xf]
        %v374 = vld [vmem:[%s272 + $0x38] sm:$0xf]
        %v375 = vld [vmem:[%s272 + $0x3c] sm:$0xf]
        %v376 = vld [vmem:[%s272 + $0x40] sm:$0xf]
        %v377 = vld [vmem:[%s272 + $0x44] sm:$0xf]
        %v378 = vld [vmem:[%s272 + $0x48] sm:$0xf]
        %v379 = vld [vmem:[%s272 + $0x4c] sm:$0xf]
        %v380 = vld [vmem:[%s272 + $0x50] sm:$0xf]
        %v381 = vld [vmem:[%s272 + $0x54] sm:$0xf]
        %v382 = vld [vmem:[%s272 + $0x58] sm:$0xf]
        %v383 = vld [vmem:[%s272 + $0x5c] sm:$0xf]
        %v384 = vld [vmem:[%s272 + $0x60] sm:$0xf]
        %v385 = vld [vmem:[%s272 + $0x64] sm:$0xf]
        %v386 = vld [vmem:[%s272 + $0x68] sm:$0xf]
        %v387 = vld [vmem:[%s272 + $0x6c] sm:$0xf]
        %v388 = vld [vmem:[%s272 + $0x70] sm:$0xf]
        %v389 = vld [vmem:[%s272 + $0x74] sm:$0xf]
        %v390 = vld [vmem:[%s272 + $0x78] sm:$0xf]
        %v391 = vld [vmem:[%s272 + $0x7c] sm:$0xf]
        %v424 = vunpack.c.l.b16 %v328
        %v425 = vunpack.c.h.b16 %v328
        %v426 = vunpack.c.l.b16 %v329
        %v427 = vunpack.c.h.b16 %v329
        %v428 = vunpack.c.l.b16 %v330
        %v429 = vunpack.c.h.b16 %v330
        %v430 = vunpack.c.l.b16 %v331
        %v431 = vunpack.c.h.b16 %v331
        %v432 = vunpack.c.l.b16 %v332
        %v433 = vunpack.c.h.b16 %v332
        %v434 = vunpack.c.l.b16 %v333
        %v435 = vunpack.c.h.b16 %v333
        %v436 = vunpack.c.l.b16 %v334
        %v437 = vunpack.c.h.b16 %v334
        %v438 = vunpack.c.l.b16 %v335
        %v439 = vunpack.c.h.b16 %v335
        %v440 = vunpack.c.l.b16 %v336
        %v441 = vunpack.c.h.b16 %v336
        %v442 = vunpack.c.l.b16 %v337
        %v443 = vunpack.c.h.b16 %v337
        %v444 = vunpack.c.l.b16 %v338
        %v445 = vunpack.c.h.b16 %v338
        %v446 = vunpack.c.l.b16 %v339
        %v447 = vunpack.c.h.b16 %v339
        %v448 = vunpack.c.l.b16 %v340
        %v449 = vunpack.c.h.b16 %v340
        %v450 = vunpack.c.l.b16 %v341
        %v451 = vunpack.c.h.b16 %v341
        %v452 = vunpack.c.l.b16 %v342
        %v453 = vunpack.c.h.b16 %v342
        %v454 = vunpack.c.l.b16 %v343
        %v455 = vunpack.c.h.b16 %v343
        %v456 = vunpack.c.l.b16 %v344
        %v457 = vunpack.c.h.b16 %v344
        %v458 = vunpack.c.l.b16 %v345
        %v459 = vunpack.c.h.b16 %v345
        %v460 = vunpack.c.l.b16 %v346
        %v461 = vunpack.c.h.b16 %v346
        %v462 = vunpack.c.l.b16 %v347
        %v463 = vunpack.c.h.b16 %v347
        %v464 = vunpack.c.l.b16 %v348
        %v465 = vunpack.c.h.b16 %v348
        %v466 = vunpack.c.l.b16 %v349
        %v467 = vunpack.c.h.b16 %v349
        %v468 = vunpack.c.l.b16 %v350
        %v469 = vunpack.c.h.b16 %v350
        %v470 = vunpack.c.l.b16 %v351
        %v471 = vunpack.c.h.b16 %v351
        %v472 = vunpack.c.l.b16 %v352
        %v473 = vunpack.c.h.b16 %v352
        %v474 = vunpack.c.l.b16 %v353
        %v475 = vunpack.c.h.b16 %v353
        %v476 = vunpack.c.l.b16 %v354
        %v477 = vunpack.c.h.b16 %v354
        %v478 = vunpack.c.l.b16 %v355
        %v479 = vunpack.c.h.b16 %v355
        %v480 = vunpack.c.l.b16 %v356
        %v481 = vunpack.c.h.b16 %v356
        %v482 = vunpack.c.l.b16 %v357
        %v483 = vunpack.c.h.b16 %v357
        %v484 = vunpack.c.l.b16 %v358
        %v485 = vunpack.c.h.b16 %v358
        %v486 = vunpack.c.l.b16 %v359
        %v487 = vunpack.c.h.b16 %v359
        %v488 = vpack.c.b16 %v426, %v424
        %v489 = vpack.c.b16 %v427, %v425
        %v490 = vpack.c.b16 %v430, %v428
        %v491 = vpack.c.b16 %v431, %v429
        %v492 = vpack.c.b16 %v434, %v432
        %v493 = vpack.c.b16 %v435, %v433
        %v494 = vpack.c.b16 %v438, %v436
        %v495 = vpack.c.b16 %v439, %v437
        %v496 = vpack.c.b16 %v442, %v440
        %v497 = vpack.c.b16 %v443, %v441
        %v498 = vpack.c.b16 %v446, %v444
        %v499 = vpack.c.b16 %v447, %v445
        %v500 = vpack.c.b16 %v450, %v448
        %v501 = vpack.c.b16 %v451, %v449
        %v502 = vpack.c.b16 %v454, %v452
        %v503 = vpack.c.b16 %v455, %v453
        %v504 = vpack.c.b16 %v458, %v456
        %v505 = vpack.c.b16 %v459, %v457
        %v506 = vpack.c.b16 %v462, %v460
        %v507 = vpack.c.b16 %v463, %v461
        %v508 = vpack.c.b16 %v466, %v464
        %v509 = vpack.c.b16 %v467, %v465
        %v510 = vpack.c.b16 %v470, %v468
        %v511 = vpack.c.b16 %v471, %v469
        %v512 = vpack.c.b16 %v474, %v472
        %v513 = vpack.c.b16 %v475, %v473
        %v514 = vpack.c.b16 %v478, %v476
        %v515 = vpack.c.b16 %v479, %v477
        %v516 = vpack.c.b16 %v482, %v480
        %v517 = vpack.c.b16 %v483, %v481
        %v518 = vpack.c.b16 %v486, %v484
        %v519 = vpack.c.b16 %v487, %v485
        %v584 = vunpack.c.l.b16 %v360
        %v585 = vunpack.c.l.b16 %v361
        %v586 = vunpack.c.l.b16 %v362
        %v587 = vunpack.c.l.b16 %v363
        %v588 = vunpack.c.l.b16 %v364
        %v589 = vunpack.c.l.b16 %v365
        %v590 = vunpack.c.l.b16 %v366
        %v591 = vunpack.c.l.b16 %v367
        %v592 = vunpack.c.l.b16 %v368
        %v593 = vunpack.c.l.b16 %v369
        %v594 = vunpack.c.l.b16 %v370
        %v595 = vunpack.c.l.b16 %v371
        %v596 = vunpack.c.l.b16 %v372
        %v597 = vunpack.c.l.b16 %v373
        %v598 = vunpack.c.l.b16 %v374
        %v599 = vunpack.c.l.b16 %v375
        %v600 = vunpack.c.l.b16 %v376
        %v601 = vunpack.c.l.b16 %v377
        %v602 = vunpack.c.l.b16 %v378
        %v603 = vunpack.c.l.b16 %v379
        %v604 = vunpack.c.l.b16 %v380
        %v605 = vunpack.c.l.b16 %v381
        %v606 = vunpack.c.l.b16 %v382
        %v607 = vunpack.c.l.b16 %v383
        %v608 = vunpack.c.l.b16 %v384
        %v609 = vunpack.c.l.b16 %v385
        %v610 = vunpack.c.l.b16 %v386
        %v611 = vunpack.c.l.b16 %v387
        %v612 = vunpack.c.l.b16 %v388
        %v613 = vunpack.c.l.b16 %v389
        %v614 = vunpack.c.l.b16 %v390
        %v615 = vunpack.c.l.b16 %v391
        %v616 = vpack.c.b16 %v585, %v584
        %v617 = vpack.c.b16 %v587, %v586
        %v618 = vpack.c.b16 %v589, %v588
        %v619 = vpack.c.b16 %v591, %v590
        %v620 = vpack.c.b16 %v593, %v592
        %v621 = vpack.c.b16 %v595, %v594
        %v622 = vpack.c.b16 %v597, %v596
        %v623 = vpack.c.b16 %v599, %v598
        %v624 = vpack.c.b16 %v601, %v600
        %v625 = vpack.c.b16 %v603, %v602
        %v626 = vpack.c.b16 %v605, %v604
        %v627 = vpack.c.b16 %v607, %v606
        %v628 = vpack.c.b16 %v609, %v608
        %v629 = vpack.c.b16 %v611, %v610
        %v630 = vpack.c.b16 %v613, %v612
        %v631 = vpack.c.b16 %v615, %v614
        %648 = vmatpush.bf16.msra.mxu0 %v623
        %649 = vmatpush.bf16.msra.mxu0 %v622
        %650 = vmatpush.bf16.msra.mxu0 %v621
        %651 = vmatpush.bf16.msra.mxu0 %v620
        %652 = vmatpush.bf16.msra.mxu0 %v619
        %653 = vmatpush.bf16.msra.mxu0 %v618
        %654 = vmatpush.bf16.msra.mxu0 %v617
        %655 = vmatpush.bf16.msra.mxu0 %v616
        %656 = vmatmul.bf16.gmra.mxu0 %v488
        %v657 = vpop.f32.mrf.mxu0
        %v658 = vadd.f32 0.0, %v657
        %v659 = vpop.f32.mrf.mxu0
        %v660 = vadd.f32 0.0, %v659
        %661 = vmatmul.bf16.gmra.mxu0 %v490
        %v662 = vpop.f32.mrf.mxu0
        %v663 = vadd.f32 0.0, %v662
        %v664 = vpop.f32.mrf.mxu0
        %v665 = vadd.f32 0.0, %v664
        %666 = vmatmul.bf16.gmra.mxu0 %v492
        %v667 = vpop.f32.mrf.mxu0
        %v668 = vadd.f32 0.0, %v667
        %v669 = vpop.f32.mrf.mxu0
        %v670 = vadd.f32 0.0, %v669
        %671 = vmatmul.bf16.gmra.mxu0 %v494
        %v672 = vpop.f32.mrf.mxu0
        %v673 = vadd.f32 0.0, %v672
        %v674 = vpop.f32.mrf.mxu0
        %v675 = vadd.f32 0.0, %v674
        %676 = vmatmul.bf16.gmra.mxu0 %v496
        %v677 = vpop.f32.mrf.mxu0
        %v678 = vadd.f32 0.0, %v677
        %v679 = vpop.f32.mrf.mxu0
        %v680 = vadd.f32 0.0, %v679
        %681 = vmatmul.bf16.gmra.mxu0 %v498
        %v682 = vpop.f32.mrf.mxu0
        %v683 = vadd.f32 0.0, %v682
        %v684 = vpop.f32.mrf.mxu0
        %v685 = vadd.f32 0.0, %v684
        %686 = vmatmul.bf16.gmra.mxu0 %v500
        %v687 = vpop.f32.mrf.mxu0
        %v688 = vadd.f32 0.0, %v687
        %v689 = vpop.f32.mrf.mxu0
        %v690 = vadd.f32 0.0, %v689
        %691 = vmatmul.bf16.gmra.mxu0 %v502
        %v692 = vpop.f32.mrf.mxu0
        %v693 = vadd.f32 0.0, %v692
        %v694 = vpop.f32.mrf.mxu0
        %v695 = vadd.f32 0.0, %v694
        %696 = vmatmul.bf16.gmra.mxu0 %v504
        %v697 = vpop.f32.mrf.mxu0
        %v698 = vadd.f32 0.0, %v697
        %v699 = vpop.f32.mrf.mxu0
        %v700 = vadd.f32 0.0, %v699
        %701 = vmatmul.bf16.gmra.mxu0 %v506
        %v702 = vpop.f32.mrf.mxu0
        %v703 = vadd.f32 0.0, %v702
        %v704 = vpop.f32.mrf.mxu0
        %v705 = vadd.f32 0.0, %v704
        %706 = vmatmul.bf16.gmra.mxu0 %v508
        %v707 = vpop.f32.mrf.mxu0
        %v708 = vadd.f32 0.0, %v707
        %v709 = vpop.f32.mrf.mxu0
        %v710 = vadd.f32 0.0, %v709
        %711 = vmatmul.bf16.gmra.mxu0 %v510
        %v712 = vpop.f32.mrf.mxu0
        %v713 = vadd.f32 0.0, %v712
        %v714 = vpop.f32.mrf.mxu0
        %v715 = vadd.f32 0.0, %v714
        %716 = vmatmul.bf16.gmra.mxu0 %v512
        %v717 = vpop.f32.mrf.mxu0
        %v718 = vadd.f32 0.0, %v717
        %v719 = vpop.f32.mrf.mxu0
        %v720 = vadd.f32 0.0, %v719
        %721 = vmatmul.bf16.gmra.mxu0 %v514
        %v722 = vpop.f32.mrf.mxu0
        %v723 = vadd.f32 0.0, %v722
        %v724 = vpop.f32.mrf.mxu0
        %v725 = vadd.f32 0.0, %v724
        %726 = vmatmul.bf16.gmra.mxu0 %v516
        %v727 = vpop.f32.mrf.mxu0
        %v728 = vadd.f32 0.0, %v727
        %v729 = vpop.f32.mrf.mxu0
        %v730 = vadd.f32 0.0, %v729
        %731 = vmatmul.bf16.gmra.mxu0 %v518
        %v732 = vpop.f32.mrf.mxu0
        %v733 = vadd.f32 0.0, %v732
        %v734 = vpop.f32.mrf.mxu0
        %v735 = vadd.f32 0.0, %v734
        %736 = vdwg.mxu0
        %737 = vmatpush.bf16.msra.mxu0 %v631
        %738 = vmatpush.bf16.msra.mxu0 %v630
        %739 = vmatpush.bf16.msra.mxu0 %v629
        %740 = vmatpush.bf16.msra.mxu0 %v628
        %741 = vmatpush.bf16.msra.mxu0 %v627
        %742 = vmatpush.bf16.msra.mxu0 %v626
        %743 = vmatpush.bf16.msra.mxu0 %v625
        %744 = vmatpush.bf16.msra.mxu0 %v624
        %745 = vmatmul.bf16.gmra.mxu0 %v489
        %v746 = vpop.f32.mrf.mxu0
        %v747 = vadd.f32 %v658, %v746
        %v748 = vpop.f32.mrf.mxu0
        %v749 = vadd.f32 %v660, %v748
        %750 = vmatmul.bf16.gmra.mxu0 %v491
        %v751 = vpop.f32.mrf.mxu0
        %v752 = vadd.f32 %v663, %v751
        %v753 = vpop.f32.mrf.mxu0
        %v754 = vadd.f32 %v665, %v753
        %755 = vmatmul.bf16.gmra.mxu0 %v493
        %v756 = vpop.f32.mrf.mxu0
        %v757 = vadd.f32 %v668, %v756
        %v758 = vpop.f32.mrf.mxu0
        %v759 = vadd.f32 %v670, %v758
        %760 = vmatmul.bf16.gmra.mxu0 %v495
        %v761 = vpop.f32.mrf.mxu0
        %v762 = vadd.f32 %v673, %v761
        %v763 = vpop.f32.mrf.mxu0
        %v764 = vadd.f32 %v675, %v763
        %765 = vmatmul.bf16.gmra.mxu0 %v497
        %v766 = vpop.f32.mrf.mxu0
        %v767 = vadd.f32 %v678, %v766
        %v768 = vpop.f32.mrf.mxu0
        %v769 = vadd.f32 %v680, %v768
        %770 = vmatmul.bf16.gmra.mxu0 %v499
        %v771 = vpop.f32.mrf.mxu0
        %v772 = vadd.f32 %v683, %v771
        %v773 = vpop.f32.mrf.mxu0
        %v774 = vadd.f32 %v685, %v773
        %775 = vmatmul.bf16.gmra.mxu0 %v501
        %v776 = vpop.f32.mrf.mxu0
        %v777 = vadd.f32 %v688, %v776
        %v778 = vpop.f32.mrf.mxu0
        %v779 = vadd.f32 %v690, %v778
        %780 = vmatmul.bf16.gmra.mxu0 %v503
        %v781 = vpop.f32.mrf.mxu0
        %v782 = vadd.f32 %v693, %v781
        %v783 = vpop.f32.mrf.mxu0
        %v784 = vadd.f32 %v695, %v783
        %785 = vmatmul.bf16.gmra.mxu0 %v505
        %v786 = vpop.f32.mrf.mxu0
        %v787 = vadd.f32 %v698, %v786
        %v788 = vpop.f32.mrf.mxu0
        %v789 = vadd.f32 %v700, %v788
        %790 = vmatmul.bf16.gmra.mxu0 %v507
        %v791 = vpop.f32.mrf.mxu0
        %v792 = vadd.f32 %v703, %v791
        %v793 = vpop.f32.mrf.mxu0
        %v794 = vadd.f32 %v705, %v793
        %795 = vmatmul.bf16.gmra.mxu0 %v509
        %v796 = vpop.f32.mrf.mxu0
        %v797 = vadd.f32 %v708, %v796
        %v798 = vpop.f32.mrf.mxu0
        %v799 = vadd.f32 %v710, %v798
        %800 = vmatmul.bf16.gmra.mxu0 %v511
        %v801 = vpop.f32.mrf.mxu0
        %v802 = vadd.f32 %v713, %v801
        %v803 = vpop.f32.mrf.mxu0
        %v804 = vadd.f32 %v715, %v803
        %805 = vmatmul.bf16.gmra.mxu0 %v513
        %v806 = vpop.f32.mrf.mxu0
        %v807 = vadd.f32 %v718, %v806
        %v808 = vpop.f32.mrf.mxu0
        %v809 = vadd.f32 %v720, %v808
        %810 = vmatmul.bf16.gmra.mxu0 %v515
        %v811 = vpop.f32.mrf.mxu0
        %v812 = vadd.f32 %v723, %v811
        %v813 = vpop.f32.mrf.mxu0
        %v814 = vadd.f32 %v725, %v813
        %815 = vmatmul.bf16.gmra.mxu0 %v517
        %v816 = vpop.f32.mrf.mxu0
        %v817 = vadd.f32 %v728, %v816
        %v818 = vpop.f32.mrf.mxu0
        %v819 = vadd.f32 %v730, %v818
        %820 = vmatmul.bf16.gmra.mxu0 %v519
        %v821 = vpop.f32.mrf.mxu0
        %v822 = vadd.f32 %v733, %v821
        %v823 = vpop.f32.mrf.mxu0
        %v824 = vadd.f32 %v735, %v823
        %825 = vdwg.mxu0
        %s826 = scalar_lea.vmem %s313, %s320 [#allocation9]
        %827 = vst [vmem:[%s826] sm:$0xff] %v747
        %828 = vst [vmem:[%s826 + $0x8] sm:$0xff] %v749
        %829 = vst [vmem:[%s826 + $0x10] sm:$0xff] %v752
        %830 = vst [vmem:[%s826 + $0x18] sm:$0xff] %v754
        %831 = vst [vmem:[%s826 + $0x20] sm:$0xff] %v757
        %832 = vst [vmem:[%s826 + $0x28] sm:$0xff] %v759
        %833 = vst [vmem:[%s826 + $0x30] sm:$0xff] %v762
        %834 = vst [vmem:[%s826 + $0x38] sm:$0xff] %v764
        %835 = vst [vmem:[%s826 + $0x40] sm:$0xff] %v767
        %836 = vst [vmem:[%s826 + $0x48] sm:$0xff] %v769
        %837 = vst [vmem:[%s826 + $0x50] sm:$0xff] %v772
        %838 = vst [vmem:[%s826 + $0x58] sm:$0xff] %v774
        %839 = vst [vmem:[%s826 + $0x60] sm:$0xff] %v777
        %840 = vst [vmem:[%s826 + $0x68] sm:$0xff] %v779
        %841 = vst [vmem:[%s826 + $0x70] sm:$0xff] %v782
        %842 = vst [vmem:[%s826 + $0x78] sm:$0xff] %v784
        %843 = vst [vmem:[%s826 + $0x80] sm:$0xff] %v787
        %844 = vst [vmem:[%s826 + $0x88] sm:$0xff] %v789
        %845 = vst [vmem:[%s826 + $0x90] sm:$0xff] %v792
        %846 = vst [vmem:[%s826 + $0x98] sm:$0xff] %v794
        %847 = vst [vmem:[%s826 + $0xa0] sm:$0xff] %v797
        %848 = vst [vmem:[%s826 + $0xa8] sm:$0xff] %v799
        %849 = vst [vmem:[%s826 + $0xb0] sm:$0xff] %v802
        %850 = vst [vmem:[%s826 + $0xb8] sm:$0xff] %v804
        %851 = vst [vmem:[%s826 + $0xc0] sm:$0xff] %v807
        %852 = vst [vmem:[%s826 + $0xc8] sm:$0xff] %v809
        %853 = vst [vmem:[%s826 + $0xd0] sm:$0xff] %v812
        %854 = vst [vmem:[%s826 + $0xd8] sm:$0xff] %v814
        %855 = vst [vmem:[%s826 + $0xe0] sm:$0xff] %v817
        %856 = vst [vmem:[%s826 + $0xe8] sm:$0xff] %v819
        %857 = vst [vmem:[%s826 + $0xf0] sm:$0xff] %v822
        %858 = vst [vmem:[%s826 + $0xf8] sm:$0xff] %v824
        // Predicated region
        $region53: #{tpu_custom_call.1} parent=35 // pred_check
          %p859 = pneg %p321
        $region54: #{tpu_custom_call.1} parent=35 // pred_check_branch
          %861 = sbr.rel (%p859) target = $region56
        $region55: #{tpu_custom_call.1} parent=35 // pred_region
          %v862 = vld [vmem:[#allocation2] sm:$0x1]
          %v863 = vadd.f32 %v747, %v749
          %v864 = vadd.f32 %v863, %v752
          %v865 = vadd.f32 %v864, %v754
          %v866 = vadd.f32 %v865, %v757
          %v867 = vadd.f32 %v866, %v759
          %v868 = vadd.f32 %v867, %v762
          %v869 = vadd.f32 %v868, %v764
          %v870 = vadd.f32 %v869, %v767
          %v871 = vadd.f32 %v870, %v769
          %v872 = vadd.f32 %v871, %v772
          %v873 = vadd.f32 %v872, %v774
          %v874 = vadd.f32 %v873, %v777
          %v875 = vadd.f32 %v874, %v779
          %v876 = vadd.f32 %v875, %v782
          %v877 = vadd.f32 %v876, %v784
          %v878 = vadd.f32 %v877, %v787
          %v879 = vadd.f32 %v878, %v789
          %v880 = vadd.f32 %v879, %v792
          %v881 = vadd.f32 %v880, %v794
          %v882 = vadd.f32 %v881, %v797
          %v883 = vadd.f32 %v882, %v799
          %v884 = vadd.f32 %v883, %v802
          %v885 = vadd.f32 %v884, %v804
          %v886 = vadd.f32 %v885, %v807
          %v887 = vadd.f32 %v886, %v809
          %v888 = vadd.f32 %v887, %v812
          %v889 = vadd.f32 %v888, %v814
          %v890 = vadd.f32 %v889, %v817
          %v891 = vadd.f32 %v890, %v819
          %v892 = vadd.f32 %v891, %v822
          %v893 = vadd.f32 %v892, %v824
          %v894 = vrot.slane %v893, 4
          %v895 = vadd.f32 %v893, %v894
          %v896 = vrot.slane %v895, 2
          %v897 = vadd.f32 %v895, %v896
          %v898 = vrot.slane %v897, 1
          %v899 = vadd.f32 %v897, %v898
          %v900 = vadd.f32 %v862, %v899
          %901 = vst [vmem:[#allocation2] sm:$0x1] %v900
        $region56: #{tpu_custom_call.1} parent=35 // pred_fallthru
          _
        // Predicated region
        $region57: #{tpu_custom_call.1} parent=35 // pred_check
          _
        $region58: #{tpu_custom_call.1} parent=35 // pred_check_branch
          %903 = sbr.rel (%p323) target = $region60
        $region59: #{tpu_custom_call.1} parent=35 // pred_region
          %v904 = vld [vmem:[%s313] sm:$0xff]
          %v905 = vld [vmem:[%s313 + $0x8] sm:$0xff]
          %v906 = vld [vmem:[%s313 + $0x10] sm:$0xff]
          %v907 = vld [vmem:[%s313 + $0x18] sm:$0xff]
          %v908 = vld [vmem:[%s313 + $0x20] sm:$0xff]
          %v909 = vld [vmem:[%s313 + $0x28] sm:$0xff]
          %v910 = vld [vmem:[%s313 + $0x30] sm:$0xff]
          %v911 = vld [vmem:[%s313 + $0x38] sm:$0xff]
          %v912 = vld [vmem:[%s313 + $0x40] sm:$0xff]
          %v913 = vld [vmem:[%s313 + $0x48] sm:$0xff]
          %v914 = vld [vmem:[%s313 + $0x50] sm:$0xff]
          %v915 = vld [vmem:[%s313 + $0x58] sm:$0xff]
          %v916 = vld [vmem:[%s313 + $0x60] sm:$0xff]
          %v917 = vld [vmem:[%s313 + $0x68] sm:$0xff]
          %v918 = vld [vmem:[%s313 + $0x70] sm:$0xff]
          %v919 = vld [vmem:[%s313 + $0x78] sm:$0xff]
          %v920 = vld [vmem:[%s313 + $0x80] sm:$0xff]
          %v921 = vld [vmem:[%s313 + $0x88] sm:$0xff]
          %v922 = vld [vmem:[%s313 + $0x90] sm:$0xff]
          %v923 = vld [vmem:[%s313 + $0x98] sm:$0xff]
          %v924 = vld [vmem:[%s313 + $0xa0] sm:$0xff]
          %v925 = vld [vmem:[%s313 + $0xa8] sm:$0xff]
          %v926 = vld [vmem:[%s313 + $0xb0] sm:$0xff]
          %v927 = vld [vmem:[%s313 + $0xb8] sm:$0xff]
          %v928 = vld [vmem:[%s313 + $0xc0] sm:$0xff]
          %v929 = vld [vmem:[%s313 + $0xc8] sm:$0xff]
          %v930 = vld [vmem:[%s313 + $0xd0] sm:$0xff]
          %v931 = vld [vmem:[%s313 + $0xd8] sm:$0xff]
          %v932 = vld [vmem:[%s313 + $0xe0] sm:$0xff]
          %v933 = vld [vmem:[%s313 + $0xe8] sm:$0xff]
          %v934 = vld [vmem:[%s313 + $0xf0] sm:$0xff]
          %v935 = vld [vmem:[%s313 + $0xf8] sm:$0xff]
          %v936 = vld [vmem:[#allocation2] sm:$0x1]
          %v937 = vmul.f32 %v936, 0.00390625
          %v939 = vperm.slane %v937, 0
          %v941 = vsub.f32 %v904, %v939
          %v942 = vsub.f32 %v905, %v939
          %v943 = vsub.f32 %v906, %v939
          %v944 = vsub.f32 %v907, %v939
          %v945 = vsub.f32 %v908, %v939
          %v946 = vsub.f32 %v909, %v939
          %v947 = vsub.f32 %v910, %v939
          %v948 = vsub.f32 %v911, %v939
          %v949 = vsub.f32 %v912, %v939
          %v950 = vsub.f32 %v913, %v939
          %v951 = vsub.f32 %v914, %v939
          %v952 = vsub.f32 %v915, %v939
          %v953 = vsub.f32 %v916, %v939
          %v954 = vsub.f32 %v917, %v939
          %v955 = vsub.f32 %v918, %v939
          %v956 = vsub.f32 %v919, %v939
          %v957 = vsub.f32 %v920, %v939
          %v958 = vsub.f32 %v921, %v939
          %v959 = vsub.f32 %v922, %v939
          %v960 = vsub.f32 %v923, %v939
          %v961 = vsub.f32 %v924, %v939
          %v962 = vsub.f32 %v925, %v939
          %v963 = vsub.f32 %v926, %v939
          %v964 = vsub.f32 %v927, %v939
          %v965 = vsub.f32 %v928, %v939
          %v966 = vsub.f32 %v929, %v939
          %v967 = vsub.f32 %v930, %v939
          %v968 = vsub.f32 %v931, %v939
          %v969 = vsub.f32 %v932, %v939
          %v970 = vsub.f32 %v933, %v939
          %v971 = vsub.f32 %v934, %v939
          %v972 = vsub.f32 %v935, %v939
          %v973 = vmul.f32 %v941, %v941
          %v974 = vmul.f32 %v942, %v942
          %v975 = vmul.f32 %v943, %v943
          %v976 = vmul.f32 %v944, %v944
          %v977 = vmul.f32 %v945, %v945
          %v978 = vmul.f32 %v946, %v946
          %v979 = vmul.f32 %v947, %v947
          %v980 = vmul.f32 %v948, %v948
          %v981 = vmul.f32 %v949, %v949
          %v982 = vmul.f32 %v950, %v950
          %v983 = vmul.f32 %v951, %v951
          %v984 = vmul.f32 %v952, %v952
          %v985 = vmul.f32 %v953, %v953
          %v986 = vmul.f32 %v954, %v954
          %v987 = vmul.f32 %v955, %v955
          %v988 = vmul.f32 %v956, %v956
          %v989 = vmul.f32 %v957, %v957
          %v990 = vmul.f32 %v958, %v958
          %v991 = vmul.f32 %v959, %v959
          %v992 = vmul.f32 %v960, %v960
          %v993 = vmul.f32 %v961, %v961
          %v994 = vmul.f32 %v962, %v962
          %v995 = vmul.f32 %v963, %v963
          %v996 = vmul.f32 %v964, %v964
          %v997 = vmul.f32 %v965, %v965
          %v998 = vmul.f32 %v966, %v966
          %v999 = vmul.f32 %v967, %v967
          %v1000 = vmul.f32 %v968, %v968
          %v1001 = vmul.f32 %v969, %v969
          %v1002 = vmul.f32 %v970, %v970
          %v1003 = vmul.f32 %v971, %v971
          %v1004 = vmul.f32 %v972, %v972
          %v1005 = vadd.f32 %v973, %v974
          %v1006 = vadd.f32 %v1005, %v975
          %v1007 = vadd.f32 %v1006, %v976
          %v1008 = vadd.f32 %v1007, %v977
          %v1009 = vadd.f32 %v1008, %v978
          %v1010 = vadd.f32 %v1009, %v979
          %v1011 = vadd.f32 %v1010, %v980
          %v1012 = vadd.f32 %v1011, %v981
          %v1013 = vadd.f32 %v1012, %v982
          %v1014 = vadd.f32 %v1013, %v983
          %v1015 = vadd.f32 %v1014, %v984
          %v1016 = vadd.f32 %v1015, %v985
          %v1017 = vadd.f32 %v1016, %v986
          %v1018 = vadd.f32 %v1017, %v987
          %v1019 = vadd.f32 %v1018, %v988
          %v1020 = vadd.f32 %v1019, %v989
          %v1021 = vadd.f32 %v1020, %v990
          %v1022 = vadd.f32 %v1021, %v991
          %v1023 = vadd.f32 %v1022, %v992
          %v1024 = vadd.f32 %v1023, %v993
          %v1025 = vadd.f32 %v1024, %v994
          %v1026 = vadd.f32 %v1025, %v995
          %v1027 = vadd.f32 %v1026, %v996
          %v1028 = vadd.f32 %v1027, %v997
          %v1029 = vadd.f32 %v1028, %v998
          %v1030 = vadd.f32 %v1029, %v999
          %v1031 = vadd.f32 %v1030, %v1000
          %v1032 = vadd.f32 %v1031, %v1001
          %v1033 = vadd.f32 %v1032, %v1002
          %v1034 = vadd.f32 %v1033, %v1003
          %v1035 = vadd.f32 %v1034, %v1004
          %v1036 = vrot.slane %v1035, 4
          %v1037 = vadd.f32 %v1035, %v1036
          %v1038 = vrot.slane %v1037, 2
          %v1039 = vadd.f32 %v1037, %v1038
          %v1040 = vrot.slane %v1039, 1
          %v1041 = vadd.f32 %v1039, %v1040
          %v1042 = vmul.f32 %v1041, 0.00390625
          %v1043 = vadd.f32 %v1042, 1e-05
          %v1044 = vrsqrt.pop %v1043
          %v1045 = vmul.f32 %v1044, %v1043
          %v1046 = vmul.f32 %v1045, %v1044
          %v1047 = vmul.f32 0.5, %v1046
          %v1048 = vsub.f32 1.5, %v1047
          %v1049 = vmul.f32 %v1044, %v1048
          %vm1050 = vweird.f32 %v1043
          %vm1051 = vweird.f32 %v1044
          %vm1052 = vmor %vm1050, %vm1051
          %v1053 = vsel %vm1052, %v1044, %v1049
          %v1054 = vld [vmem:[%s281] sm:$0x1]
          %v1055 = vmul.f32 %v1053, %v1054
          %v1056 = vld [vmem:[%s319] sm:$0x1]
          %v1057 = vmul.f32 %v937, %v1055
          %v1058 = vsub.f32 %v1056, %v1057
          %v1059 = vperm.slane %v1055, 0
          %v1060 = vmul.f32 %v904, %v1059
          %v1061 = vmul.f32 %v905, %v1059
          %v1062 = vmul.f32 %v906, %v1059
          %v1063 = vmul.f32 %v907, %v1059
          %v1064 = vmul.f32 %v908, %v1059
          %v1065 = vmul.f32 %v909, %v1059
          %v1066 = vmul.f32 %v910, %v1059
          %v1067 = vmul.f32 %v911, %v1059
          %v1068 = vmul.f32 %v912, %v1059
          %v1069 = vmul.f32 %v913, %v1059
          %v1070 = vmul.f32 %v914, %v1059
          %v1071 = vmul.f32 %v915, %v1059
          %v1072 = vmul.f32 %v916, %v1059
          %v1073 = vmul.f32 %v917, %v1059
          %v1074 = vmul.f32 %v918, %v1059
          %v1075 = vmul.f32 %v919, %v1059
          %v1076 = vmul.f32 %v920, %v1059
          %v1077 = vmul.f32 %v921, %v1059
          %v1078 = vmul.f32 %v922, %v1059
          %v1079 = vmul.f32 %v923, %v1059
          %v1080 = vmul.f32 %v924, %v1059
          %v1081 = vmul.f32 %v925, %v1059
          %v1082 = vmul.f32 %v926, %v1059
          %v1083 = vmul.f32 %v927, %v1059
          %v1084 = vmul.f32 %v928, %v1059
          %v1085 = vmul.f32 %v929, %v1059
          %v1086 = vmul.f32 %v930, %v1059
          %v1087 = vmul.f32 %v931, %v1059
          %v1088 = vmul.f32 %v932, %v1059
          %v1089 = vmul.f32 %v933, %v1059
          %v1090 = vmul.f32 %v934, %v1059
          %v1091 = vmul.f32 %v935, %v1059
          %v1093 = vperm.slane %v1058, 0
          %v1095 = vadd.f32 %v1060, %v1093
          %v1096 = vadd.f32 %v1061, %v1093
          %v1097 = vadd.f32 %v1062, %v1093
          %v1098 = vadd.f32 %v1063, %v1093
          %v1099 = vadd.f32 %v1064, %v1093
          %v1100 = vadd.f32 %v1065, %v1093
          %v1101 = vadd.f32 %v1066, %v1093
          %v1102 = vadd.f32 %v1067, %v1093
          %v1103 = vadd.f32 %v1068, %v1093
          %v1104 = vadd.f32 %v1069, %v1093
          %v1105 = vadd.f32 %v1070, %v1093
          %v1106 = vadd.f32 %v1071, %v1093
          %v1107 = vadd.f32 %v1072, %v1093
          %v1108 = vadd.f32 %v1073, %v1093
          %v1109 = vadd.f32 %v1074, %v1093
          %v1110 = vadd.f32 %v1075, %v1093
          %v1111 = vadd.f32 %v1076, %v1093
          %v1112 = vadd.f32 %v1077, %v1093
          %v1113 = vadd.f32 %v1078, %v1093
          %v1114 = vadd.f32 %v1079, %v1093
          %v1115 = vadd.f32 %v1080, %v1093
          %v1116 = vadd.f32 %v1081, %v1093
          %v1117 = vadd.f32 %v1082, %v1093
          %v1118 = vadd.f32 %v1083, %v1093
          %v1119 = vadd.f32 %v1084, %v1093
          %v1120 = vadd.f32 %v1085, %v1093
          %v1121 = vadd.f32 %v1086, %v1093
          %v1122 = vadd.f32 %v1087, %v1093
          %v1123 = vadd.f32 %v1088, %v1093
          %v1124 = vadd.f32 %v1089, %v1093
          %v1125 = vadd.f32 %v1090, %v1093
          %v1126 = vadd.f32 %v1091, %v1093
          %v1127 = vmax.f32 %v1095, 0.0
          %v1128 = vmax.f32 %v1096, 0.0
          %v1129 = vmax.f32 %v1097, 0.0
          %v1130 = vmax.f32 %v1098, 0.0
          %v1131 = vmax.f32 %v1099, 0.0
          %v1132 = vmax.f32 %v1100, 0.0
          %v1133 = vmax.f32 %v1101, 0.0
          %v1134 = vmax.f32 %v1102, 0.0
          %v1135 = vmax.f32 %v1103, 0.0
          %v1136 = vmax.f32 %v1104, 0.0
          %v1137 = vmax.f32 %v1105, 0.0
          %v1138 = vmax.f32 %v1106, 0.0
          %v1139 = vmax.f32 %v1107, 0.0
          %v1140 = vmax.f32 %v1108, 0.0
          %v1141 = vmax.f32 %v1109, 0.0
          %v1142 = vmax.f32 %v1110, 0.0
          %v1143 = vmax.f32 %v1111, 0.0
          %v1144 = vmax.f32 %v1112, 0.0
          %v1145 = vmax.f32 %v1113, 0.0
          %v1146 = vmax.f32 %v1114, 0.0
          %v1147 = vmax.f32 %v1115, 0.0
          %v1148 = vmax.f32 %v1116, 0.0
          %v1149 = vmax.f32 %v1117, 0.0
          %v1150 = vmax.f32 %v1118, 0.0
          %v1151 = vmax.f32 %v1119, 0.0
          %v1152 = vmax.f32 %v1120, 0.0
          %v1153 = vmax.f32 %v1121, 0.0
          %v1154 = vmax.f32 %v1122, 0.0
          %v1155 = vmax.f32 %v1123, 0.0
          %v1156 = vmax.f32 %v1124, 0.0
          %v1157 = vmax.f32 %v1125, 0.0
          %v1158 = vmax.f32 %v1126, 0.0
          %1159 = vst [vmem:[%s313] sm:$0xff] %v1127
          %1160 = vst [vmem:[%s313 + $0x8] sm:$0xff] %v1128
          %1161 = vst [vmem:[%s313 + $0x10] sm:$0xff] %v1129
          %1162 = vst [vmem:[%s313 + $0x18] sm:$0xff] %v1130
          %1163 = vst [vmem:[%s313 + $0x20] sm:$0xff] %v1131
          %1164 = vst [vmem:[%s313 + $0x28] sm:$0xff] %v1132
          %1165 = vst [vmem:[%s313 + $0x30] sm:$0xff] %v1133
          %1166 = vst [vmem:[%s313 + $0x38] sm:$0xff] %v1134
          %1167 = vst [vmem:[%s313 + $0x40] sm:$0xff] %v1135
          %1168 = vst [vmem:[%s313 + $0x48] sm:$0xff] %v1136
          %1169 = vst [vmem:[%s313 + $0x50] sm:$0xff] %v1137
          %1170 = vst [vmem:[%s313 + $0x58] sm:$0xff] %v1138
          %1171 = vst [vmem:[%s313 + $0x60] sm:$0xff] %v1139
          %1172 = vst [vmem:[%s313 + $0x68] sm:$0xff] %v1140
          %1173 = vst [vmem:[%s313 + $0x70] sm:$0xff] %v1141
          %1174 = vst [vmem:[%s313 + $0x78] sm:$0xff] %v1142
          %1175 = vst [vmem:[%s313 + $0x80] sm:$0xff] %v1143
          %1176 = vst [vmem:[%s313 + $0x88] sm:$0xff] %v1144
          %1177 = vst [vmem:[%s313 + $0x90] sm:$0xff] %v1145
          %1178 = vst [vmem:[%s313 + $0x98] sm:$0xff] %v1146
          %1179 = vst [vmem:[%s313 + $0xa0] sm:$0xff] %v1147
          %1180 = vst [vmem:[%s313 + $0xa8] sm:$0xff] %v1148
          %1181 = vst [vmem:[%s313 + $0xb0] sm:$0xff] %v1149
          %1182 = vst [vmem:[%s313 + $0xb8] sm:$0xff] %v1150
          %1183 = vst [vmem:[%s313 + $0xc0] sm:$0xff] %v1151
          %1184 = vst [vmem:[%s313 + $0xc8] sm:$0xff] %v1152
          %1185 = vst [vmem:[%s313 + $0xd0] sm:$0xff] %v1153
          %1186 = vst [vmem:[%s313 + $0xd8] sm:$0xff] %v1154
          %1187 = vst [vmem:[%s313 + $0xe0] sm:$0xff] %v1155
          %1188 = vst [vmem:[%s313 + $0xe8] sm:$0xff] %v1156
          %1189 = vst [vmem:[%s313 + $0xf0] sm:$0xff] %v1157
          %1190 = vst [vmem:[%s313 + $0xf8] sm:$0xff] %v1158
        $region60: #{tpu_custom_call.1} parent=35 // pred_fallthru
          _
        %s1191 = sand.u32 %s157, 1
        %s1192 = scalar_lea.sflag [#allocation5], %s1191
        %s1193 = sand.u32 %s157, 1
        %s1194 = smul.addr %s1193, 256
        %s1195 = scalar_lea.vmem [#allocation9], %s1194
        // Predicated region
        $region61: #{tpu_custom_call.1} parent=35 // pred_check
          %p1196 = pneg %p167
        $region62: #{tpu_custom_call.1} parent=35 // pred_check_branch
          %1198 = sbr.rel (%p1196) target = $region64
        $region63: #{tpu_custom_call.1} parent=35 // pred_region
          %1200 = vsyncadd %s1192, 0
          %s1201 = smul.addr %s27, 8
          %s1202 = scalar_lea.hbm %s4, %s1201
          %s1203 = sshll.u32 %s1195, 4
          %s1204 = int_to_ptr.vmem [resolvable:$true] %s1203
          %s1205 = sshll.u32 %s1202, 4
          %s1206 = int_to_ptr.hbm [resolvable:$true] %s1205
          %1211 = dma.vmem_to_hbm [thread:$0]  %s1204, 4096, %s1206, %s1192, 128, 256, 8
        $region64: #{tpu_custom_call.1} parent=35 // pred_fallthru
          _
      $region36: #{tpu_custom_call.1} parent=5 // pred_fallthru
        _
      %p1212 = scmp.le.s32.totalorder 2, %s17
      // Predicated region
      $region65: #{tpu_custom_call.1} parent=5 // pred_check
        %p1213 = pneg %p1212
      $region66: #{tpu_custom_call.1} parent=5 // pred_check_branch
        %1215 = sbr.rel (%p1213) target = $region68
      $region67: #{tpu_custom_call.1} parent=5 // pred_region
        %s1216 = ssub.s32 %s17, 2
        // Predicated region
        $region69: #{tpu_custom_call.1} parent=67 // pred_check
          %p1217 = pneg %p173
        $region70: #{tpu_custom_call.1} parent=67 // pred_check_branch
          %1219 = sbr.rel (%p1217) target = $region72
        $region71: #{tpu_custom_call.1} parent=67 // pred_region
          %s1220 = sand.u32 %s158, 1
          %s1221 = scalar_lea.sflag [#allocation5], %s1220
          %s1222 = sand.u32 %s158, 1
          %s1223 = smul.addr %s1222, 256
          %s1224 = scalar_lea.vmem [#allocation9], %s1223
          %1226 = dma.done %s1221, 4096
        $region72: #{tpu_custom_call.1} parent=67 // pred_fallthru
          _
      $region68: #{tpu_custom_call.1} parent=5 // pred_fallthru
        _
    $region6: #{tpu_custom_call.1} parent=1 // loop_footer
      %s21 = sadd.s32 1, %s17
    $region7: #{tpu_custom_call.1} parent=1 // loop_footer_branch
      %16 = sbr.rel target = $region3
    $region8: #{tpu_custom_call.1} parent=1 // loop_exit
      _
    %1227 = vsyncpa [#allocation4], 1
    %s1228 = scalar_lea.sflag [#allocation4], 1
    %1229 = vsyncpa %s1228, 1
    %1230 = vsyncpa [#allocation7], 1
    %s1231 = scalar_lea.sflag [#allocation7], 1
    %1232 = vsyncpa %s1231, 1
    %1233 = vsyncpa [#allocation5], 1
    %s1234 = scalar_lea.sflag [#allocation5], 1
    %1235 = vsyncpa %s1234, 1

</llo_original>
